<compile_context>
chip_gen: v7x
topology: tpu7x:2x2x1
jax: 0.10.0
libtpu: 0.0.40
codegen_flags: <defaults>
</compile_context>

<pallas_src>
import jax
import jax.numpy as jnp
from jax.experimental import pallas as pl
from jax.experimental.pallas import tpu as pltpu

A_CONST = 1.7159
S_CONST = 2.0 / 3.0

_LANE = 128
_MIN_BLOCKS = 8                 # keep >= 8 (even) blocks on big inputs: pipelining + v7x megacore
_SINGLE_BLOCK_BYTES = 1 << 20   # below ~1 MiB a single block is fine (fixed overhead dominates)


def _squash_kernel(x_ref, o_ref):
    # Elementwise: A * tanh(S * x). tanh -> EUP slot, multiply -> VPU; both
    # have large slack vs. the HBM DMA, so f32 math is free at the roofline.
    # Partial edge blocks: stale VMEM rows get computed but are never written
    # back to the valid region (Pallas edge masking), so output is unaffected.
    x = x_ref[...].astype(jnp.float32)
    o_ref[...] = (A_CONST * jnp.tanh(S_CONST * x)).astype(o_ref.dtype)


def _chip_tuning():
    """Return (target_block_bytes, vmem_limit_bytes or None) per TPU generation."""
    kind = ""
    try:
        kind = jax.devices()[0].device_kind.lower()
    except Exception:
        pass
    if "7" in kind:
        # v7x: ~3.2 TB/s per TC, 64 MiB VMEM -> large blocks, explicit VMEM limit
        # (2 operands x 2 buffers x 8 MiB = 32 MiB in flight, comfortable under 48 MiB).
        return 8 << 20, 48 << 20
    if "v6" in kind or "6e" in kind:
        # v6e: ~1.4 TB/s, 32 MiB scoped default covers 4 MiB blocks (16 MiB in flight).
        return 4 << 20, None
    # v5e and unknown: block size is not the lever; stay under the 16 MiB default.
    return 2 << 20, None


def _squash_2d(x2d, *, target_block_bytes, vmem_limit_bytes):
    """Run the kernel over a lane-dense (rows, lanes) slab."""
    rows, lanes = x2d.shape
    dtype = x2d.dtype
    itemsize = jnp.dtype(dtype).itemsize
    sublanes = {4: 8, 2: 16, 1: 32}.get(itemsize, 8)

    row_bytes = lanes * itemsize
    total_bytes = rows * row_bytes

    if total_bytes <= _SINGLE_BLOCK_BYTES or rows <= sublanes:
        # Tiny input: one block (block dim == full dim is legal even if not a
        # multiple of 8); per-step fixed overhead dominates anyway.
        tile_rows = rows
    else:
        max_rows_by_bytes = max(target_block_bytes // row_bytes, 1)
        rows_for_min_blocks = pl.cdiv(rows, _MIN_BLOCKS)   # force a pipelined, shardable grid
        cap = min(max_rows_by_bytes, rows_for_min_blocks)
        tile_rows = max((cap // sublanes) * sublanes, sublanes)

    grid = (pl.cdiv(rows, tile_rows),)
    n = rows * lanes

    cp_kwargs = dict(dimension_semantics=("parallel",))   # shards grid across TCs on v7x
    if vmem_limit_bytes is not None:
        cp_kwargs["vmem_limit_bytes"] = vmem_limit_bytes

    return pl.pallas_call(
        _squash_kernel,
        out_shape=jax.ShapeDtypeStruct((rows, lanes), dtype),
        grid_spec=pltpu.PrefetchScalarGridSpec(
            num_scalar_prefetch=0,
            grid=grid,
            in_specs=[pl.BlockSpec((tile_rows, lanes), lambda i: (i, 0))],
            out_specs=pl.BlockSpec((tile_rows, lanes), lambda i: (i, 0)),
        ),
        compiler_params=pltpu.CompilerParams(**cp_kwargs),
        cost_estimate=pl.CostEstimate(
            flops=2 * n, transcendentals=n, bytes_accessed=2 * n * itemsize),
    )(x2d)


def sigmoid_squashing_activation(x: jax.Array) -> jax.Array:
    """Apply A*tanh(S*x) elementwise via a Pallas TPU kernel. Preserves shape/dtype."""
    # TODO(synk): integer/fp8 inputs cast back to the input dtype would truncate
    # the [-1.716, 1.716] range; the reference module only ever sees floats.
    orig_shape = x.shape
    orig_dtype = x.dtype
    total = x.size
    if total == 0:
        return x

    itemsize = jnp.dtype(orig_dtype).itemsize
    sublanes = {4: 8, 2: 16, 1: 32}.get(itemsize, 8)
    target_block_bytes, vmem_limit_bytes = _chip_tuning()

    # ---- Path A: minor dim already lane-friendly ---------------------------
    # Collapsing only the leading dims keeps the minor (lane) dimension intact,
    # so the reshape is layout-preserving under (8,128) tiling -> no HBM
    # relayout pass on input or output.
    if (x.ndim >= 2 and orig_shape[-1] % _LANE == 0
            and sublanes * orig_shape[-1] * itemsize <= (16 << 20)):
        lanes = orig_shape[-1]
        rows = total // lanes
        out2d = _squash_2d(x.reshape(rows, lanes),
                           target_block_bytes=target_block_bytes,
                           vmem_limit_bytes=vmem_limit_bytes)
        return out2d.reshape(orig_shape)

    # ---- Path B: flat total divisible by a lane width ----------------------
    # Prefer the widest lane width that still leaves sublane-dense rows
    # (rows >= sublanes); fall back to any divisible candidate.
    lanes = None
    for cand in (4096, 2048, 1024, 512, 256, _LANE):
        if total % cand == 0 and (total // cand) >= sublanes:
            lanes = cand
            break
    if lanes is None:
        for cand in (4096, 2048, 1024, 512, 256, _LANE):
            if total % cand == 0:
                lanes = cand
                break

    x_flat = jnp.ravel(x)

    if lanes is not None:
        out2d = _squash_2d(x_flat.reshape(total // lanes, lanes),
                           target_block_bytes=target_block_bytes,
                           vmem_limit_bytes=vmem_limit_bytes)
        return out2d.reshape(orig_shape)

    # ---- Path C: ragged total (bulk + tail) --------------------------------
    # Kernel on the largest 128-aligned prefix; finish the (<128-elem) tail
    # with plain jnp.  Avoids the extra full read+write passes of
    # jnp.pad(whole array) + slice(whole output).
    n_main = (total // _LANE) * _LANE
    tail = x_flat[n_main:]
    out_tail = (A_CONST * jnp.tanh(S_CONST * tail.astype(jnp.float32))).astype(orig_dtype)
    if n_main == 0:
        out_flat = out_tail
    else:
        out_main = _squash_2d(x_flat[:n_main].reshape(n_main // _LANE, _LANE),
                              target_block_bytes=target_block_bytes,
                              vmem_limit_bytes=vmem_limit_bytes)
        out_flat = jnp.concatenate([out_main.reshape(-1), out_tail])
    return out_flat.reshape(orig_shape)


if __name__ == "__main__":
    key = jax.random.PRNGKey(0)
    k1, k2, k3 = jax.random.split(key, 3)

    # NCHW input, consistent with a LeNet-style conv activation.
    x = jax.random.normal(k1, (2, 4, 16, 16), dtype=jnp.float32)
    y = sigmoid_squashing_activation(x)
    jax.block_until_ready(y)
    y_ref = A_CONST * jnp.tanh(S_CONST * x)
    assert y.shape == x.shape and y.dtype == x.dtype
    assert jnp.max(jnp.abs(y - y_ref)) < 1e-5

    # Lane-friendly minor dim -> exercises the layout-preserving fast path.
    x2 = jax.random.normal(k2, (2, 8, 256), dtype=jnp.float32)
    y2 = sigmoid_squashing_activation(x2)
    jax.block_until_ready(y2)
    assert jnp.max(jnp.abs(y2 - (A_CONST * jnp.tanh(S_CONST * x2)))) < 1e-5

    # Ragged total (3*50*7 = 1050) -> exercises the bulk + tail fallback.
    x3 = jax.random.normal(k3, (3, 50, 7), dtype=jnp.float32)
    y3 = sigmoid_squashing_activation(x3)
    jax.block_until_ready(y3)
    assert jnp.max(jnp.abs(y3 - (A_CONST * jnp.tanh(S_CONST * x3)))) < 1e-5

    # bf16 roundtrip (math in f32 inside the kernel, cast back on store).
    xb = jax.random.normal(k1, (4, 128), dtype=jnp.bfloat16)
    yb = sigmoid_squashing_activation(xb)
    jax.block_until_ready(yb)
    yb_ref = (A_CONST * jnp.tanh(S_CONST * xb.astype(jnp.float32))).astype(jnp.bfloat16)
    assert yb.dtype == jnp.bfloat16
    assert jnp.max(jnp.abs(yb.astype(jnp.float32) - yb_ref.astype(jnp.float32))) <= 2e-2

    print("KERNEL_OK")
</pallas_src>

<mosaic_0001>
module attributes {stable_mosaic.version = 11 : i64} {
  func.func @_squash_kernel(%arg0: i32, %arg1: memref<8x256xf32, #tpu.memory_space<vmem>>, %arg2: memref<8x256xf32, #tpu.memory_space<vmem>>) attributes {dimension_semantics = [#tpu.dimension_semantics<parallel>], iteration_bounds = array<i64: 1>, scalar_prefetch = 0 : i64, scratch_operands = 0 : i64, tpu.core_type = #tpu.core_type<tc>, window_params = [{transform_indices = @transform_0, window_bounds = array<i64: 8, 256>}, {transform_indices = @transform_1, window_bounds = array<i64: 8, 256>}]} {
    %c0 = arith.constant 0 : index
    %c0_0 = arith.constant 0 : index
    %0 = vector.load %arg1[%c0, %c0_0] : memref<8x256xf32, #tpu.memory_space<vmem>>, vector<8x256xf32>
    %cst = arith.constant 0.666666686 : f32
    %1 = vector.broadcast %cst : f32 to vector<8x256xf32>
    %2 = arith.mulf %1, %0 : vector<8x256xf32>
    %3 = math.tanh %2 : vector<8x256xf32>
    %cst_1 = arith.constant 1.715900e+00 : f32
    %4 = vector.broadcast %cst_1 : f32 to vector<8x256xf32>
    %5 = arith.mulf %4, %3 : vector<8x256xf32>
    %c0_2 = arith.constant 0 : index
    %c0_3 = arith.constant 0 : index
    %6 = vector.load %arg2[%c0_2, %c0_3] : memref<8x256xf32, #tpu.memory_space<vmem>>, vector<8x256xf32>
    tpu.vector_store %arg2[%c0_2, %c0_3], %5 {strides = array<i32>} : memref<8x256xf32, #tpu.memory_space<vmem>>, vector<8x256xf32>,
    return
  }
  func.func @transform_0(%arg0: i32) -> (i32, i32) {
    %c0_i32 = arith.constant 0 : i32
    %c0_i32_0 = arith.constant 0 : i32
    return %arg0, %c0_i32 : i32, i32
  }
  func.func @transform_1(%arg0: i32) -> (i32, i32) {
    %c0_i32 = arith.constant 0 : i32
    %c0_i32_0 = arith.constant 0 : i32
    return %arg0, %c0_i32 : i32, i32
  }
}

</mosaic_0001>

<llo_original>
// kernel: tpu_custom_call.1
$region0: #{tpu_custom_call.1}
  #allocation0 [shape = 'u32[]', space=smem, size = 0x4, offset = 0x4, fixed_abs, tag = 'smem constant byte address 0x4 - core index']
  #allocation1 [shape = 'u32[144,128]{1,0:T(1,128)}', space=vmem, size = 0x12000, scoped, tag = 'internal scratch']
  %s0 = inlined_call_operand.hbm [shape: f32[8,256], index: 0, kind: input, shape index: {}]
  %s1 = inlined_call_operand.hbm [shape: f32[8,256], index: 1, kind: output, shape index: {}]
  %s2 = sld [smem:[#allocation0]]
  $region18: #{tpu_custom_call.1} parent=0
    _
  %s4 = ssub.s32 1, %s2
  %s5 = scalar_select 0, %s4, %s2
  $region1: #{tpu_custom_call.1} parent=0
    #allocation2 [shape = 'u8[8192]{0}', space=vmem, size = 0x2000, scoped, tag = 'input window, operand 0, single buffered']
    #allocation3 [shape = 's32[1]{0}', space=sflag, size = 0x4, scoped, tag = 'scoped memory for tpu_custom_call.1']
    #allocation4 [shape = 's32[1]{0}', space=sflag, size = 0x4, scoped, tag = 'scoped memory for tpu_custom_call.1']
    #allocation5 [shape = 'u8[8192]{0}', space=vmem, size = 0x2000, scoped, tag = 'output window, operand 0, single buffered']
    %6 = vsyncpa [#allocation3], 0
    %7 = vsyncpa [#allocation4], 0
    // Predicated region
    $region2: #{tpu_custom_call.1} parent=1 // pred_check
      _
    $region3: #{tpu_custom_call.1} parent=1 // pred_check_branch
      %9 = sbr.rel (0) target = $region5
    $region4: #{tpu_custom_call.1} parent=1 // pred_region
      %s11 = ssub.s32 256, 256
      %12 = vsyncadd [#allocation3], %s11
      %s14 = sshll.u32 [#allocation2], 4
      %s15 = int_to_ptr.vmem [resolvable:$true] %s14
      %17 = dma.hbm_to_vmem [thread:$0]  %s0, 256, %s15, [#allocation3]
    $region5: #{tpu_custom_call.1} parent=1 // pred_fallthru
      _
    // Predicated region
    $region6: #{tpu_custom_call.1} parent=1 // pred_check
      _
    $region7: #{tpu_custom_call.1} parent=1 // pred_check_branch
      %19 = sbr.rel (0) target = $region9
    $region8: #{tpu_custom_call.1} parent=1 // pred_region
      %20 = dma.done [#allocation3], 256
    $region9: #{tpu_custom_call.1} parent=1 // pred_fallthru
      _
    %v21 = vld [vmem:[#allocation2] sm:$0xff]
    %v22 = vld [vmem:[#allocation2 + $0x8] sm:$0xff]
    %v23 = vmul.f32 %v21, 0.6666667
    %v24 = vmul.f32 %v22, 0.6666667
    %v25 = vtanh.pop %v23
    %v26 = vtanh.pop %v24
    %v27 = vmul.f32 %v25, 1.7159
    %v28 = vmul.f32 %v26, 1.7159
    %29 = vst [vmem:[#allocation5] sm:$0xff] %v27
    %30 = vst [vmem:[#allocation5 + $0x8] sm:$0xff] %v28
    // Predicated region
    $region10: #{tpu_custom_call.1} parent=1 // pred_check
      _
    $region11: #{tpu_custom_call.1} parent=1 // pred_check_branch
      %32 = sbr.rel (0) target = $region13
    $region12: #{tpu_custom_call.1} parent=1 // pred_region
      %s34 = ssub.s32 256, 256
      %35 = vsyncadd [#allocation4], %s34
      %s37 = sshll.u32 [#allocation5], 4
      %s38 = int_to_ptr.vmem [resolvable:$true] %s37
      %40 = dma.vmem_to_hbm [thread:$0]  %s38, 256, %s1, [#allocation4]
    $region13: #{tpu_custom_call.1} parent=1 // pred_fallthru
      _
    // Predicated region
    $region14: #{tpu_custom_call.1} parent=1 // pred_check
      _
    $region15: #{tpu_custom_call.1} parent=1 // pred_check_branch
      %42 = sbr.rel (0) target = $region17
    $region16: #{tpu_custom_call.1} parent=1 // pred_region
      %43 = dma.done [#allocation4], 256
    $region17: #{tpu_custom_call.1} parent=1 // pred_fallthru
      _
    %44 = vsyncpa [#allocation3], 1
    %45 = vsyncpa [#allocation4], 1

</llo_original>
